<compile_context>
chip_gen: v7x
topology: tpu7x:2x2x1
jax: 0.10.0
libtpu: 0.0.40
codegen_flags: <defaults>
</compile_context>

<pallas_src>
import math
from functools import partial

import jax
import jax.numpy as jnp
from jax.experimental import pallas as pl
from jax.experimental.pallas import tpu as pltpu


# ----------------------------- Pallas kernels ------------------------------

def _kv_kernel(x_ref, wk_ref, wv_ref, k_ref, v_ref, *, compute_dtype):
    # sr_ratio == 1 path: one read of x, two lane-dense (rows, C) outputs.
    xc = x_ref[...].astype(compute_dtype)
    k_ref[...] = jnp.dot(xc, wk_ref[...].astype(compute_dtype),
                         preferred_element_type=jnp.float32).astype(k_ref.dtype)
    v_ref[...] = jnp.dot(xc, wv_ref[...].astype(compute_dtype),
                         preferred_element_type=jnp.float32).astype(v_ref.dtype)


def _sr_ln_kv_kernel(xr_ref, wsr_ref, bsr_ref, g_ref, beta_ref, wk_ref, wv_ref,
                     k_ref, v_ref, *, eps, compute_dtype):
    # sr_ratio > 1 path: y = LayerNorm(xr @ Wsr + bsr); k = y @ Wk; v = y @ Wv.
    # LN math in f32; reduced tokens never round-trip through HBM.
    acc = jnp.dot(xr_ref[...].astype(compute_dtype), wsr_ref[...].astype(compute_dtype),
                  preferred_element_type=jnp.float32)
    y = acc + bsr_ref[...].astype(jnp.float32)
    mu = jnp.mean(y, axis=-1, keepdims=True)
    var = jnp.mean((y - mu) * (y - mu), axis=-1, keepdims=True)
    y = (y - mu) * jax.lax.rsqrt(var + eps)
    y = y * g_ref[...].astype(jnp.float32) + beta_ref[...].astype(jnp.float32)
    yc = y.astype(compute_dtype)
    k_ref[...] = jnp.dot(yc, wk_ref[...].astype(compute_dtype),
                         preferred_element_type=jnp.float32).astype(k_ref.dtype)
    v_ref[...] = jnp.dot(yc, wv_ref[...].astype(compute_dtype),
                         preferred_element_type=jnp.float32).astype(v_ref.dtype)


def _fused_attn_kernel(x_ref, wq_ref, k_ref, v_ref, wp_ref, bp_ref, o_ref, *,
                       scale, num_heads, head_dim, compute_dtype):
    # One (batch, q-tile) per grid step. Fuses q-projection, per-head attention and the
    # output projection. Heads are sliced in-register from lane-dense (rows, C) tiles;
    # the output projection is accumulated per head (o_h @ Wproj[h*hd:(h+1)*hd, :]) so
    # no concatenate is needed and a single lane-dense (rows, C) store is emitted.
    bq = x_ref.shape[1]
    C = wp_ref.shape[1]
    xc = x_ref[0].astype(compute_dtype)
    q_all = (jnp.dot(xc, wq_ref[...].astype(compute_dtype),
                     preferred_element_type=jnp.float32) * scale).astype(compute_dtype)
    k_all = k_ref[0].astype(compute_dtype)
    v_all = v_ref[0].astype(compute_dtype)
    wp = wp_ref[...].astype(compute_dtype)
    acc = jnp.zeros((bq, C), jnp.float32)
    for h in range(num_heads):
        lo = h * head_dim
        hi = lo + head_dim
        qh = q_all[:, lo:hi]
        kh = k_all[:, lo:hi]
        vh = v_all[:, lo:hi]
        # contract last dims — no explicit K transpose (no XLU traffic)
        s = jax.lax.dot_general(qh, kh, (((1,), (1,)), ((), ())),
                                preferred_element_type=jnp.float32)
        s = s - jnp.max(s, axis=-1, keepdims=True)            # softmax in f32 (v5e-safe)
        p = jnp.exp(s)
        p = p * pl.reciprocal(jnp.sum(p, axis=-1, keepdims=True), approx=True)  # EUP slot
        oh = jnp.dot(p.astype(compute_dtype), vh, preferred_element_type=jnp.float32)
        acc = acc + jnp.dot(oh.astype(compute_dtype), wp[lo:hi, :],
                            preferred_element_type=jnp.float32)
    o_ref[0] = (acc + bp_ref[...].astype(jnp.float32)).astype(o_ref.dtype)


# ------------------------------ kernel wrappers ------------------------------

def pallas_kv_proj(x, wk, wv, *, compute_dtype=jnp.float32, block_m=256):
    """Fused K/V projection (sr_ratio == 1): one pass over x, two (M, C) outputs."""
    M, K = x.shape
    C = wk.shape[1]
    bm = min(block_m, M)
    return pl.pallas_call(
        partial(_kv_kernel, compute_dtype=compute_dtype),
        out_shape=(jax.ShapeDtypeStruct((M, C), x.dtype),
                   jax.ShapeDtypeStruct((M, C), x.dtype)),
        grid=(pl.cdiv(M, bm),),
        in_specs=[pl.BlockSpec((bm, K), lambda i: (i, 0)),
                  pl.BlockSpec((K, C), lambda i: (0, 0)),
                  pl.BlockSpec((K, C), lambda i: (0, 0))],
        out_specs=(pl.BlockSpec((bm, C), lambda i: (i, 0)),
                   pl.BlockSpec((bm, C), lambda i: (i, 0))),
        compiler_params=pltpu.CompilerParams(dimension_semantics=("parallel",)),
    )(x, wk, wv)


def pallas_sr_ln_kv(xr, w_sr, b_sr, gamma, beta, wk, wv, *, ln_eps=1e-5,
                    compute_dtype=jnp.float32, block_m=256):
    """Fused spatial-reduction (conv-as-matmul) + LayerNorm + K/V projection."""
    M, K = xr.shape
    C = wk.shape[1]
    bm = min(block_m, M)
    row = pl.BlockSpec((1, C), lambda i: (0, 0))
    return pl.pallas_call(
        partial(_sr_ln_kv_kernel, eps=ln_eps, compute_dtype=compute_dtype),
        out_shape=(jax.ShapeDtypeStruct((M, C), xr.dtype),
                   jax.ShapeDtypeStruct((M, C), xr.dtype)),
        grid=(pl.cdiv(M, bm),),
        in_specs=[pl.BlockSpec((bm, K), lambda i: (i, 0)),
                  pl.BlockSpec((K, C), lambda i: (0, 0)),
                  row, row, row,
                  pl.BlockSpec((C, C), lambda i: (0, 0)),
                  pl.BlockSpec((C, C), lambda i: (0, 0))],
        out_specs=(pl.BlockSpec((bm, C), lambda i: (i, 0)),
                   pl.BlockSpec((bm, C), lambda i: (i, 0))),
        compiler_params=pltpu.CompilerParams(dimension_semantics=("parallel",)),
    )(xr, w_sr, b_sr[None, :], gamma[None, :], beta[None, :], wk, wv)


def pallas_fused_attention(x, wq, k, v, wproj, bproj, scale, *, num_heads,
                           compute_dtype=jnp.float32, block_q=256):
    """Fused q-proj + multi-head attention + output projection.

    x: (B, N, C); k, v: (B, Nk, C); returns (B, N, C)."""
    B, N, C = x.shape
    _, Nk, _ = k.shape
    hd = C // num_heads
    bq = min(block_q, N)          # Q-tiling keeps the (bq, Nk) f32 scores VMEM-bounded (v7x)
    return pl.pallas_call(
        partial(_fused_attn_kernel, scale=scale, num_heads=num_heads, head_dim=hd,
                compute_dtype=compute_dtype),
        out_shape=jax.ShapeDtypeStruct((B, N, C), x.dtype),
        grid=(B, pl.cdiv(N, bq)),
        in_specs=[
            pl.BlockSpec((1, bq, C), lambda b, qi: (b, qi, 0)),
            pl.BlockSpec((C, C), lambda b, qi: (0, 0)),
            pl.BlockSpec((1, Nk, C), lambda b, qi: (b, 0, 0)),
            pl.BlockSpec((1, Nk, C), lambda b, qi: (b, 0, 0)),
            pl.BlockSpec((C, C), lambda b, qi: (0, 0)),
            pl.BlockSpec((1, C), lambda b, qi: (0, 0)),
        ],
        out_specs=pl.BlockSpec((1, bq, C), lambda b, qi: (b, qi, 0)),
        compiler_params=pltpu.CompilerParams(dimension_semantics=("parallel", "parallel")),
    )(x, wq, k, v, wproj, bproj[None, :])


# ------------------------------ Module wrapper ------------------------------

def init_attention_params(key, dim, num_heads, sr_ratio):
    ks = jax.random.split(key, 4)
    std = 0.02
    params = {
        # nn.Linear stores (out, in); generated directly as (in, out) — synthetic init.
        "wq": jax.random.normal(ks[0], (dim, dim), jnp.float32) * std,
        "wkv": jax.random.normal(ks[1], (dim, 2 * dim), jnp.float32) * std,
        "wproj": jax.random.normal(ks[2], (dim, dim), jnp.float32) * std,
        "bproj": jnp.zeros((dim,), jnp.float32),
    }
    if sr_ratio > 1:
        fan_out = sr_ratio * sr_ratio * dim
        # conv weight in PyTorch layout (out_c, in_c, kh, kw)
        params["w_sr"] = jax.random.normal(
            ks[3], (dim, dim, sr_ratio, sr_ratio), jnp.float32
        ) * math.sqrt(2.0 / fan_out)
        params["b_sr"] = jnp.zeros((dim,), jnp.float32)
        params["ln_g"] = jnp.ones((dim,), jnp.float32)
        params["ln_b"] = jnp.zeros((dim,), jnp.float32)
    return params


def attention_forward(params, x, H, W, *, num_heads, sr_ratio,
                      compute_dtype=jnp.float32, block_m=256, block_q=256):
    B, N, C = x.shape
    hd = C // num_heads
    scale = hd ** (-0.5)
    wk = params["wkv"][:, :C]
    wv = params["wkv"][:, C:]

    # ---- K/V side: spatial reduction (Conv2d k=s=sr as patch matmul) + LN + KV projection,
    #      fully fused in one kernel (or just the fused KV projection for sr_ratio == 1)
    if sr_ratio > 1:
        sr = sr_ratio
        Hs, Ws = H // sr, W // sr
        xr = x.reshape(B, Hs, sr, Ws, sr, C).transpose(0, 1, 3, 2, 4, 5)    # im2col glue
        xr = xr.reshape(B * Hs * Ws, sr * sr * C)
        # conv weight (co, ci, kh, kw) -> (kh, kw, ci, co) -> (sr*sr*C, C)
        w_mat = params["w_sr"].transpose(2, 3, 1, 0).reshape(sr * sr * C, C)
        k2, v2 = pallas_sr_ln_kv(xr, w_mat, params["b_sr"], params["ln_g"], params["ln_b"],
                                 wk, wv, compute_dtype=compute_dtype, block_m=block_m)
        Nk = Hs * Ws
    else:
        k2, v2 = pallas_kv_proj(x.reshape(B * N, C), wk, wv,
                                compute_dtype=compute_dtype, block_m=block_m)
        Nk = N
    k = k2.reshape(B, Nk, C)
    v = v2.reshape(B, Nk, C)

    # ---- Q side: q-projection + multi-head attention + output projection in one kernel,
    #      output written directly as (B, N, C)
    out = pallas_fused_attention(x, params["wq"], k, v, params["wproj"], params["bproj"],
                                 scale, num_heads=num_heads,
                                 compute_dtype=compute_dtype, block_q=block_q)
    # attn_drop / proj_drop are identity at p=0.0 (inference)
    return out


# ------------------------------ reference (pure JAX) ------------------------

def attention_reference(params, x, H, W, *, num_heads, sr_ratio):
    B, N, C = x.shape
    hd = C // num_heads
    scale = hd ** (-0.5)
    q = (x @ params["wq"]).reshape(B, N, num_heads, hd).transpose(0, 2, 1, 3)
    if sr_ratio > 1:
        sr = sr_ratio
        x_nchw = x.transpose(0, 2, 1).reshape(B, C, H, W)
        y = jax.lax.conv_general_dilated(
            x_nchw, params["w_sr"], window_strides=(sr, sr), padding="VALID",
            dimension_numbers=("NCHW", "OIHW", "NCHW"))
        y = y + params["b_sr"][None, :, None, None]
        x_ = y.reshape(B, C, -1).transpose(0, 2, 1)
        mu = x_.mean(-1, keepdims=True)
        var = ((x_ - mu) ** 2).mean(-1, keepdims=True)
        x_ = (x_ - mu) / jnp.sqrt(var + 1e-5) * params["ln_g"] + params["ln_b"]
    else:
        x_ = x
    kv = (x_ @ params["wkv"]).reshape(B, -1, 2, num_heads, hd).transpose(2, 0, 3, 1, 4)
    k, v = kv[0], kv[1]
    attn = (q @ k.transpose(0, 1, 3, 2)) * scale
    attn = jax.nn.softmax(attn, axis=-1)
    o = (attn @ v).transpose(0, 2, 1, 3).reshape(B, N, C)
    return o @ params["wproj"] + params["bproj"]


# ----------------------------------- main -----------------------------------

if __name__ == "__main__":
    key = jax.random.PRNGKey(0)
    kx, kp = jax.random.split(key)

    B, H, W = 2, 8, 8
    dim, num_heads, sr_ratio = 32, 4, 2
    N = H * W
    x = jax.random.normal(kx, (B, N, dim), jnp.float32)

    # --- sr_ratio = 2 path (spatial reduction + fused LayerNorm/KV), f32 compute ---
    params = init_attention_params(kp, dim, num_heads, sr_ratio)
    out = attention_forward(params, x, H, W, num_heads=num_heads, sr_ratio=sr_ratio)
    out = jax.block_until_ready(out)
    ref = attention_reference(params, x, H, W, num_heads=num_heads, sr_ratio=sr_ratio)
    assert out.shape == (B, N, dim)
    assert jnp.allclose(out, ref, atol=2e-4, rtol=1e-3), float(jnp.max(jnp.abs(out - ref)))

    # --- sr_ratio = 1 path, f32 compute ---
    params1 = init_attention_params(kp, dim, num_heads, 1)
    out1 = attention_forward(params1, x, H, W, num_heads=num_heads, sr_ratio=1)
    out1 = jax.block_until_ready(out1)
    ref1 = attention_reference(params1, x, H, W, num_heads=num_heads, sr_ratio=1)
    assert jnp.allclose(out1, ref1, atol=2e-4, rtol=1e-3), float(jnp.max(jnp.abs(out1 - ref1)))

    # --- bf16 MXU inputs / f32 accumulation + f32 softmax (v6e/v7x fast path) ---
    out_bf = attention_forward(params, x, H, W, num_heads=num_heads, sr_ratio=sr_ratio,
                               compute_dtype=jnp.bfloat16)
    out_bf = jax.block_until_ready(out_bf)
    assert jnp.allclose(out_bf, ref, atol=3e-3, rtol=5e-2), float(jnp.max(jnp.abs(out_bf - ref)))

    print("KERNEL_OK")
</pallas_src>

<mosaic_0001>
module attributes {stable_mosaic.version = 11 : i64} {
  func.func @_sr_ln_kv_kernel(%arg0: i32, %arg1: memref<32x128xf32, #tpu.memory_space<vmem>>, %arg2: memref<128x32xf32, #tpu.memory_space<vmem>>, %arg3: memref<1x32xf32, #tpu.memory_space<vmem>>, %arg4: memref<1x32xf32, #tpu.memory_space<vmem>>, %arg5: memref<1x32xf32, #tpu.memory_space<vmem>>, %arg6: memref<32x32xf32, #tpu.memory_space<vmem>>, %arg7: memref<32x32xf32, #tpu.memory_space<vmem>>, %arg8: memref<32x32xf32, #tpu.memory_space<vmem>>, %arg9: memref<32x32xf32, #tpu.memory_space<vmem>>) attributes {dimension_semantics = [#tpu.dimension_semantics<parallel>], iteration_bounds = array<i64: 1>, scalar_prefetch = 0 : i64, scratch_operands = 0 : i64, tpu.core_type = #tpu.core_type<tc>, window_params = [{transform_indices = @transform_0, window_bounds = array<i64: 32, 128>}, {pipeline_mode = #tpu.pipeline_mode<synchronous>, transform_indices = @transform_1, window_bounds = array<i64: 128, 32>}, {pipeline_mode = #tpu.pipeline_mode<synchronous>, transform_indices = @transform_2, window_bounds = array<i64: 1, 32>}, {pipeline_mode = #tpu.pipeline_mode<synchronous>, transform_indices = @transform_3, window_bounds = array<i64: 1, 32>}, {pipeline_mode = #tpu.pipeline_mode<synchronous>, transform_indices = @transform_4, window_bounds = array<i64: 1, 32>}, {pipeline_mode = #tpu.pipeline_mode<synchronous>, transform_indices = @transform_5, window_bounds = array<i64: 32, 32>}, {pipeline_mode = #tpu.pipeline_mode<synchronous>, transform_indices = @transform_6, window_bounds = array<i64: 32, 32>}, {transform_indices = @transform_7, window_bounds = array<i64: 32, 32>}, {transform_indices = @transform_8, window_bounds = array<i64: 32, 32>}]} {
    %c0 = arith.constant 0 : index
    %c0_0 = arith.constant 0 : index
    %0 = vector.load %arg1[%c0, %c0_0] : memref<32x128xf32, #tpu.memory_space<vmem>>, vector<32x128xf32>
    %c0_1 = arith.constant 0 : index
    %c0_2 = arith.constant 0 : index
    %1 = vector.load %arg2[%c0_1, %c0_2] : memref<128x32xf32, #tpu.memory_space<vmem>>, vector<128x32xf32>
    %cst = arith.constant dense<0.000000e+00> : vector<32x32xf32>
    %2 = tpu.matmul %0, %1, %cst {dimension_numbers = #tpu.dot_dimension_numbers<[1], [0], [0], [1], [0, 0, 1, 1], [], []>} : vector<32x128xf32>, vector<128x32xf32>, vector<32x32xf32> -> vector<32x32xf32>
    %c0_3 = arith.constant 0 : index
    %c0_4 = arith.constant 0 : index
    %3 = vector.load %arg3[%c0_3, %c0_4] : memref<1x32xf32, #tpu.memory_space<vmem>>, vector<1x32xf32>
    %4 = vector.broadcast %3 : vector<1x32xf32> to vector<32x32xf32>
    %5 = arith.addf %2, %4 : vector<32x32xf32>
    %cst_5 = arith.constant dense<0.000000e+00> : vector<32xf32>
    %6 = vector.multi_reduction <add>, %5, %cst_5 [1] : vector<32x32xf32> to vector<32xf32>
    %7 = vector.shape_cast %6 : vector<32xf32> to vector<32x1xf32>
    %cst_6 = arith.constant 3.200000e+01 : f32
    %8 = vector.broadcast %cst_6 : f32 to vector<32x1xf32>
    %9 = arith.divf %7, %8 : vector<32x1xf32>
    %10 = vector.broadcast %9 : vector<32x1xf32> to vector<32x32xf32>
    %11 = arith.subf %5, %10 : vector<32x32xf32>
    %12 = vector.broadcast %9 : vector<32x1xf32> to vector<32x32xf32>
    %13 = arith.subf %5, %12 : vector<32x32xf32>
    %14 = arith.mulf %11, %13 : vector<32x32xf32>
    %cst_7 = arith.constant dense<0.000000e+00> : vector<32xf32>
    %15 = vector.multi_reduction <add>, %14, %cst_7 [1] : vector<32x32xf32> to vector<32xf32>
    %16 = vector.shape_cast %15 : vector<32xf32> to vector<32x1xf32>
    %cst_8 = arith.constant 3.200000e+01 : f32
    %17 = vector.broadcast %cst_8 : f32 to vector<32x1xf32>
    %18 = arith.divf %16, %17 : vector<32x1xf32>
    %19 = vector.broadcast %9 : vector<32x1xf32> to vector<32x32xf32>
    %20 = arith.subf %5, %19 : vector<32x32xf32>
    %cst_9 = arith.constant 9.99999974E-6 : f32
    %21 = vector.broadcast %cst_9 : f32 to vector<32x1xf32>
    %22 = arith.addf %18, %21 : vector<32x1xf32>
    %23 = math.rsqrt %22 : vector<32x1xf32>
    %24 = vector.broadcast %23 : vector<32x1xf32> to vector<32x32xf32>
    %25 = arith.mulf %20, %24 : vector<32x32xf32>
    %c0_10 = arith.constant 0 : index
    %c0_11 = arith.constant 0 : index
    %26 = vector.load %arg4[%c0_10, %c0_11] : memref<1x32xf32, #tpu.memory_space<vmem>>, vector<1x32xf32>
    %27 = vector.broadcast %26 : vector<1x32xf32> to vector<32x32xf32>
    %28 = arith.mulf %25, %27 : vector<32x32xf32>
    %c0_12 = arith.constant 0 : index
    %c0_13 = arith.constant 0 : index
    %29 = vector.load %arg5[%c0_12, %c0_13] : memref<1x32xf32, #tpu.memory_space<vmem>>, vector<1x32xf32>
    %30 = vector.broadcast %29 : vector<1x32xf32> to vector<32x32xf32>
    %31 = arith.addf %28, %30 : vector<32x32xf32>
    %c0_14 = arith.constant 0 : index
    %c0_15 = arith.constant 0 : index
    %32 = vector.load %arg6[%c0_14, %c0_15] : memref<32x32xf32, #tpu.memory_space<vmem>>, vector<32x32xf32>
    %cst_16 = arith.constant dense<0.000000e+00> : vector<32x32xf32>
    %33 = tpu.matmul %31, %32, %cst_16 {dimension_numbers = #tpu.dot_dimension_numbers<[1], [0], [0], [1], [0, 0, 1, 1], [], []>} : vector<32x32xf32>, vector<32x32xf32>, vector<32x32xf32> -> vector<32x32xf32>
    %c0_17 = arith.constant 0 : index
    %c0_18 = arith.constant 0 : index
    %34 = vector.load %arg8[%c0_17, %c0_18] : memref<32x32xf32, #tpu.memory_space<vmem>>, vector<32x32xf32>
    tpu.vector_store %arg8[%c0_17, %c0_18], %33 {strides = array<i32>} : memref<32x32xf32, #tpu.memory_space<vmem>>, vector<32x32xf32>,
    %c0_19 = arith.constant 0 : index
    %c0_20 = arith.constant 0 : index
    %35 = vector.load %arg7[%c0_19, %c0_20] : memref<32x32xf32, #tpu.memory_space<vmem>>, vector<32x32xf32>
    %cst_21 = arith.constant dense<0.000000e+00> : vector<32x32xf32>
    %36 = tpu.matmul %31, %35, %cst_21 {dimension_numbers = #tpu.dot_dimension_numbers<[1], [0], [0], [1], [0, 0, 1, 1], [], []>} : vector<32x32xf32>, vector<32x32xf32>, vector<32x32xf32> -> vector<32x32xf32>
    %c0_22 = arith.constant 0 : index
    %c0_23 = arith.constant 0 : index
    %37 = vector.load %arg9[%c0_22, %c0_23] : memref<32x32xf32, #tpu.memory_space<vmem>>, vector<32x32xf32>
    tpu.vector_store %arg9[%c0_22, %c0_23], %36 {strides = array<i32>} : memref<32x32xf32, #tpu.memory_space<vmem>>, vector<32x32xf32>,
    return
  }
  func.func @transform_0(%arg0: i32) -> (i32, i32) {
    %c0_i32 = arith.constant 0 : i32
    %c0_i32_0 = arith.constant 0 : i32
    return %arg0, %c0_i32 : i32, i32
  }
  func.func @transform_1(%arg0: i32) -> (i32, i32) {
    %c0_i32 = arith.constant 0 : i32
    %c0_i32_0 = arith.constant 0 : i32
    %c0_i32_1 = arith.constant 0 : i32
    return %c0_i32, %c0_i32_0 : i32, i32
  }
  func.func @transform_2(%arg0: i32) -> (i32, i32) {
    %c0_i32 = arith.constant 0 : i32
    %c0_i32_0 = arith.constant 0 : i32
    %c0_i32_1 = arith.constant 0 : i32
    return %c0_i32, %c0_i32_0 : i32, i32
  }
  func.func @transform_3(%arg0: i32) -> (i32, i32) {
    %c0_i32 = arith.constant 0 : i32
    %c0_i32_0 = arith.constant 0 : i32
    %c0_i32_1 = arith.constant 0 : i32
    return %c0_i32, %c0_i32_0 : i32, i32
  }
  func.func @transform_4(%arg0: i32) -> (i32, i32) {
    %c0_i32 = arith.constant 0 : i32
    %c0_i32_0 = arith.constant 0 : i32
    %c0_i32_1 = arith.constant 0 : i32
    return %c0_i32, %c0_i32_0 : i32, i32
  }
  func.func @transform_5(%arg0: i32) -> (i32, i32) {
    %c0_i32 = arith.constant 0 : i32
    %c0_i32_0 = arith.constant 0 : i32
    %c0_i32_1 = arith.constant 0 : i32
    return %c0_i32, %c0_i32_0 : i32, i32
  }
  func.func @transform_6(%arg0: i32) -> (i32, i32) {
    %c0_i32 = arith.constant 0 : i32
    %c0_i32_0 = arith.constant 0 : i32
    %c0_i32_1 = arith.constant 0 : i32
    return %c0_i32, %c0_i32_0 : i32, i32
  }
  func.func @transform_7(%arg0: i32) -> (i32, i32) {
    %c0_i32 = arith.constant 0 : i32
    %c0_i32_0 = arith.constant 0 : i32
    return %arg0, %c0_i32 : i32, i32
  }
  func.func @transform_8(%arg0: i32) -> (i32, i32) {
    %c0_i32 = arith.constant 0 : i32
    %c0_i32_0 = arith.constant 0 : i32
    return %arg0, %c0_i32 : i32, i32
  }
}

</mosaic_0001>

<llo_original>
// kernel: tpu_custom_call.1
$region0: #{tpu_custom_call.1}
  #allocation0 [shape = 'u32[]', space=smem, size = 0x4, offset = 0x4, fixed_abs, tag = 'smem constant byte address 0x4 - core index']
  #allocation1 [shape = 'u32[144,128]{1,0:T(1,128)}', space=vmem, size = 0x12000, scoped, tag = 'internal scratch']
  %s0 = inlined_call_operand.vmem [shape: f32[32,128], index: 0, kind: input, shape index: {}]
  %s1 = inlined_call_operand.vmem [shape: f32[128,32], index: 1, kind: input, shape index: {}]
  %s2 = inlined_call_operand.vmem [shape: f32[1,32], index: 2, kind: input, shape index: {}]
  %s3 = inlined_call_operand.vmem [shape: f32[1,32], index: 3, kind: input, shape index: {}]
  %s4 = inlined_call_operand.vmem [shape: f32[1,32], index: 4, kind: input, shape index: {}]
  %s5 = inlined_call_operand.vmem [shape: f32[32,32], index: 5, kind: input, shape index: {}]
  %s6 = inlined_call_operand.vmem [shape: f32[32,32], index: 6, kind: input, shape index: {}]
  %s7 = inlined_call_operand.hbm [shape: f32[32,32], index: 7, kind: output, shape index: {0}]
  %s8 = inlined_call_operand.hbm [shape: f32[32,32], index: 8, kind: output, shape index: {1}]
  %9 = xla_tuple %s7, %s8
  %s10 = sld [smem:[#allocation0]]
  $region46: #{tpu_custom_call.1} parent=0
    _
  %s12 = ssub.s32 1, %s10
  %s13 = scalar_select 0, %s12, %s10
  $region1: #{tpu_custom_call.1} parent=0
    #allocation2 [shape = 'u8[16384]{0}', space=vmem, size = 0x4000, scoped, tag = 'output window, operand 0, single buffered']
    #allocation3 [shape = 's32[1]{0}', space=sflag, size = 0x4, scoped, tag = 'scoped memory for tpu_custom_call.1']
    #allocation4 [shape = 'u8[16384]{0}', space=vmem, size = 0x4000, scoped, tag = 'output window, operand 1, single buffered']
    #allocation5 [shape = 's32[1]{0}', space=sflag, size = 0x4, scoped, tag = 'scoped memory for tpu_custom_call.1']
    %14 = vsyncpa [#allocation3], 0
    %15 = vsyncpa [#allocation5], 0
    // Predicated region
    $region2: #{tpu_custom_call.1} parent=1 // pred_check
      _
    $region3: #{tpu_custom_call.1} parent=1 // pred_check_branch
      %17 = sbr.rel (0) target = $region5
    $region4: #{tpu_custom_call.1} parent=1 // pred_region
      _
    $region5: #{tpu_custom_call.1} parent=1 // pred_fallthru
      _
    // Predicated region
    $region6: #{tpu_custom_call.1} parent=1 // pred_check
      _
    $region7: #{tpu_custom_call.1} parent=1 // pred_check_branch
      %19 = sbr.rel (0) target = $region9
    $region8: #{tpu_custom_call.1} parent=1 // pred_region
      _
    $region9: #{tpu_custom_call.1} parent=1 // pred_fallthru
      _
    // Predicated region
    $region10: #{tpu_custom_call.1} parent=1 // pred_check
      _
    $region11: #{tpu_custom_call.1} parent=1 // pred_check_branch
      %21 = sbr.rel (0) target = $region13
    $region12: #{tpu_custom_call.1} parent=1 // pred_region
      _
    $region13: #{tpu_custom_call.1} parent=1 // pred_fallthru
      _
    // Predicated region
    $region14: #{tpu_custom_call.1} parent=1 // pred_check
      _
    $region15: #{tpu_custom_call.1} parent=1 // pred_check_branch
      %23 = sbr.rel (0) target = $region17
    $region16: #{tpu_custom_call.1} parent=1 // pred_region
      _
    $region17: #{tpu_custom_call.1} parent=1 // pred_fallthru
      _
    // Predicated region
    $region18: #{tpu_custom_call.1} parent=1 // pred_check
      _
    $region19: #{tpu_custom_call.1} parent=1 // pred_check_branch
      %25 = sbr.rel (0) target = $region21
    $region20: #{tpu_custom_call.1} parent=1 // pred_region
      _
    $region21: #{tpu_custom_call.1} parent=1 // pred_fallthru
      _
    // Predicated region
    $region22: #{tpu_custom_call.1} parent=1 // pred_check
      _
    $region23: #{tpu_custom_call.1} parent=1 // pred_check_branch
      %27 = sbr.rel (0) target = $region25
    $region24: #{tpu_custom_call.1} parent=1 // pred_region
      _
    $region25: #{tpu_custom_call.1} parent=1 // pred_fallthru
      _
    // Predicated region
    $region26: #{tpu_custom_call.1} parent=1 // pred_check
      _
    $region27: #{tpu_custom_call.1} parent=1 // pred_check_branch
      %29 = sbr.rel (0) target = $region29
    $region28: #{tpu_custom_call.1} parent=1 // pred_region
      _
    $region29: #{tpu_custom_call.1} parent=1 // pred_fallthru
      _
    %v30 = vld [vmem:[%s0] sm:$0xff]
    %v31 = vld [vmem:[%s0 + $0x8] sm:$0xff]
    %v32 = vld [vmem:[%s0 + $0x10] sm:$0xff]
    %v33 = vld [vmem:[%s0 + $0x18] sm:$0xff]
    %v34 = vld [vmem:[%s1] sm:$0xff]
    %v35 = vld [vmem:[%s1 + $0x8] sm:$0xff]
    %v36 = vld [vmem:[%s1 + $0x10] sm:$0xff]
    %v37 = vld [vmem:[%s1 + $0x18] sm:$0xff]
    %v38 = vld [vmem:[%s1 + $0x20] sm:$0xff]
    %v39 = vld [vmem:[%s1 + $0x28] sm:$0xff]
    %v40 = vld [vmem:[%s1 + $0x30] sm:$0xff]
    %v41 = vld [vmem:[%s1 + $0x38] sm:$0xff]
    %v42 = vld [vmem:[%s1 + $0x40] sm:$0xff]
    %v43 = vld [vmem:[%s1 + $0x48] sm:$0xff]
    %v44 = vld [vmem:[%s1 + $0x50] sm:$0xff]
    %v45 = vld [vmem:[%s1 + $0x58] sm:$0xff]
    %v46 = vld [vmem:[%s1 + $0x60] sm:$0xff]
    %v47 = vld [vmem:[%s1 + $0x68] sm:$0xff]
    %v48 = vld [vmem:[%s1 + $0x70] sm:$0xff]
    %v49 = vld [vmem:[%s1 + $0x78] sm:$0xff]
    %v50 = vld [vmem:[%s2] sm:$0x1]
    %v52 = vlaneseq
    %v53 = vshrl.u32 %v52, 7
    %v54 = vsub.s32 0, %v53
    %v55 = vrot.slane %v50, %v54
    %57 = vmatprep.subr.mxu0 0.0
    %58 = vmatpush1.msra.mxu0 %v34
    %59 = vmatprep.subr.mxu0 0.0
    %60 = vmatpush1.msra.mxu0 %v35
    %61 = vmatprep.subr.mxu0 0.0
    %62 = vmatpush1.msra.mxu0 %v36
    %63 = vmatprep.subr.mxu0 0.0
    %64 = vmatpush1.msra.mxu0 %v37
    %65 = vmatprep.subr.mxu0 0.0
    %66 = vmatpush1.msra.mxu0 %v38
    %67 = vmatprep.subr.mxu0 0.0
    %68 = vmatpush1.msra.mxu0 %v39
    %69 = vmatprep.subr.mxu0 0.0
    %70 = vmatpush1.msra.mxu0 %v40
    %71 = vmatprep.subr.mxu0 0.0
    %72 = vmatpush1.msra.mxu0 %v41
    %73 = vmatprep.subr.mxu0 0.0
    %74 = vmatpush1.msra.mxu0 %v42
    %75 = vmatprep.subr.mxu0 0.0
    %76 = vmatpush1.msra.mxu0 %v43
    %77 = vmatprep.subr.mxu0 0.0
    %78 = vmatpush1.msra.mxu0 %v44
    %79 = vmatprep.subr.mxu0 0.0
    %80 = vmatpush1.msra.mxu0 %v45
    %81 = vmatprep.subr.mxu0 0.0
    %82 = vmatpush1.msra.mxu0 %v46
    %83 = vmatprep.subr.mxu0 0.0
    %84 = vmatpush1.msra.mxu0 %v47
    %85 = vmatprep.subr.mxu0 0.0
    %86 = vmatpush1.msra.mxu0 %v48
    %87 = vmatprep.subr.mxu0 0.0
    %88 = vmatpush1.msra.mxu0 %v49
    %89 = vmatprep.subr.mxu0 0.0
    %90 = vmatpush1.msra.mxu0 0.0
    %91 = vmatprep.subr.mxu0 0.0
    %92 = vmatpush1.msra.mxu0 0.0
    %93 = vmatprep.subr.mxu0 0.0
    %94 = vmatpush1.msra.mxu0 0.0
    %95 = vmatprep.subr.mxu0 0.0
    %96 = vmatpush1.msra.mxu0 0.0
    %97 = vmatprep.subr.mxu0 0.0
    %98 = vmatpush1.msra.mxu0 0.0
    %99 = vmatprep.subr.mxu0 0.0
    %100 = vmatpush1.msra.mxu0 0.0
    %101 = vmatprep.subr.mxu0 0.0
    %102 = vmatpush1.msra.mxu0 0.0
    %103 = vmatprep.subr.mxu0 0.0
    %104 = vmatpush1.msra.mxu0 0.0
    %105 = vmatprep.subr.mxu0 0.0
    %106 = vmatpush1.msra.mxu0 0.0
    %107 = vmatprep.subr.mxu0 0.0
    %108 = vmatpush1.msra.mxu0 0.0
    %109 = vmatprep.subr.mxu0 0.0
    %110 = vmatpush1.msra.mxu0 0.0
    %111 = vmatprep.subr.mxu0 0.0
    %112 = vmatpush1.msra.mxu0 0.0
    %113 = vmatprep.subr.mxu0 0.0
    %114 = vmatpush1.msra.mxu0 0.0
    %115 = vmatprep.subr.mxu0 0.0
    %116 = vmatpush1.msra.mxu0 0.0
    %117 = vmatprep.subr.mxu0 0.0
    %118 = vmatpush1.msra.mxu0 0.0
    %119 = vmatprep.subr.mxu0 0.0
    %120 = vmatpush1.msra.mxu0 0.0
    %121 = vmatprep.mubr.f32.mxu0 0.0
    %122 = vmatmul.mubr.f32.gmra.mrb[0].mxu0 %v30
    %v123 = vpop.f32.mrb[0].mxu0
    %v124 = vadd.f32 %v55, %v123
    %v125 = vpop.f32.mrb[0].mxu0
    %126 = vmatprep.mubr.f32.mxu0 0.0
    %127 = vmatmul.mubr.f32.gmra.mrb[0].mxu0 %v31
    %v128 = vpop.f32.mrb[0].mxu0
    %v129 = vadd.f32 %v55, %v128
    %v130 = vpop.f32.mrb[0].mxu0
    %131 = vmatprep.mubr.f32.mxu0 0.0
    %132 = vmatmul.mubr.f32.gmra.mrb[0].mxu0 %v32
    %v133 = vpop.f32.mrb[0].mxu0
    %v134 = vadd.f32 %v55, %v133
    %v135 = vpop.f32.mrb[0].mxu0
    %136 = vmatprep.mubr.f32.mxu0 0.0
    %137 = vmatmul.mubr.f32.gmra.mrb[0].mxu0 %v33
    %v138 = vpop.f32.mrb[0].mxu0
    %v139 = vadd.f32 %v55, %v138
    %v140 = vpop.f32.mrb[0].mxu0
    %141 = vdwg.mxu0
    %vm142 = vcmask 261120
    %v143 = vsel %vm142, %v124, 0.0
    %144 = vadd.xlane.f32.xlu0 %v143
    %v145 = vpop.xlane.xlu0 %144
    %v146 = vsel %vm142, %v129, 0.0
    %147 = vadd.xlane.f32.xlu0 %v146
    %v148 = vpop.xlane.xlu0 %147
    %v149 = vsel %vm142, %v134, 0.0
    %150 = vadd.xlane.f32.xlu0 %v149
    %v151 = vpop.xlane.xlu0 %150
    %v152 = vsel %vm142, %v139, 0.0
    %153 = vadd.xlane.f32.xlu0 %v152
    %v154 = vpop.xlane.xlu0 %153
    %v155 = vrcp.pop 32.0
    %v156 = vmul.f32 %v145, %v155
    %v157 = vmul.f32 %v148, %v155
    %v158 = vmul.f32 %v151, %v155
    %v159 = vmul.f32 %v154, %v155
    %v160 = vsub.f32 %v124, %v156
    %v161 = vsub.f32 %v129, %v157
    %v162 = vsub.f32 %v134, %v158
    %v163 = vsub.f32 %v139, %v159
    %v164 = vmul.f32 %v160, %v160
    %v165 = vmul.f32 %v161, %v161
    %v166 = vmul.f32 %v162, %v162
    %v167 = vmul.f32 %v163, %v163
    %v168 = vsel %vm142, %v164, 0.0
    %169 = vadd.xlane.f32.xlu0 %v168
    %v170 = vpop.xlane.xlu0 %169
    %v171 = vsel %vm142, %v165, 0.0
    %172 = vadd.xlane.f32.xlu0 %v171
    %v173 = vpop.xlane.xlu0 %172
    %v174 = vsel %vm142, %v166, 0.0
    %175 = vadd.xlane.f32.xlu0 %v174
    %v176 = vpop.xlane.xlu0 %175
    %v177 = vsel %vm142, %v167, 0.0
    %178 = vadd.xlane.f32.xlu0 %v177
    %v179 = vpop.xlane.xlu0 %178
    %v180 = vmul.f32 %v170, %v155
    %v181 = vmul.f32 %v173, %v155
    %v182 = vmul.f32 %v176, %v155
    %v183 = vmul.f32 %v179, %v155
    %v184 = vadd.f32 %v180, 1e-05
    %v185 = vadd.f32 %v181, 1e-05
    %v186 = vadd.f32 %v182, 1e-05
    %v187 = vadd.f32 %v183, 1e-05
    %v188 = vrsqrt.pop %v184
    %v189 = vrsqrt.pop %v185
    %v190 = vrsqrt.pop %v186
    %v191 = vrsqrt.pop %v187
    %v192 = vmul.f32 %v160, %v188
    %v193 = vmul.f32 %v161, %v189
    %v194 = vmul.f32 %v162, %v190
    %v195 = vmul.f32 %v163, %v191
    %v196 = vld [vmem:[%s3] sm:$0x1]
    %v198 = vlaneseq
    %v199 = vshrl.u32 %v198, 7
    %v200 = vsub.s32 0, %v199
    %v201 = vrot.slane %v196, %v200
    %v203 = vmul.f32 %v192, %v201
    %v204 = vmul.f32 %v193, %v201
    %v205 = vmul.f32 %v194, %v201
    %v206 = vmul.f32 %v195, %v201
    %v207 = vld [vmem:[%s4] sm:$0x1]
    %v209 = vlaneseq
    %v210 = vshrl.u32 %v209, 7
    %v211 = vsub.s32 0, %v210
    %v212 = vrot.slane %v207, %v211
    %v214 = vadd.f32 %v203, %v212
    %v215 = vadd.f32 %v204, %v212
    %v216 = vadd.f32 %v205, %v212
    %v217 = vadd.f32 %v206, %v212
    %v218 = vld [vmem:[%s5] sm:$0xff]
    %v219 = vld [vmem:[%s5 + $0x8] sm:$0xff]
    %v220 = vld [vmem:[%s5 + $0x10] sm:$0xff]
    %v221 = vld [vmem:[%s5 + $0x18] sm:$0xff]
    %v223 = vsel %vm142, %v214, 0
    %v226 = vsel %vm142, %v215, 0
    %v229 = vsel %vm142, %v216, 0
    %v232 = vsel %vm142, %v217, 0
    %234 = vmatprep.subr.mxu0 0.0
    %235 = vmatpush1.msra.mxu0 %v218
    %236 = vmatprep.subr.mxu0 0.0
    %237 = vmatpush1.msra.mxu0 %v219
    %238 = vmatprep.subr.mxu0 0.0
    %239 = vmatpush1.msra.mxu0 %v220
    %240 = vmatprep.subr.mxu0 0.0
    %241 = vmatpush1.msra.mxu0 %v221
    %242 = vmatprep.subr.mxu0 0.0
    %243 = vmatpush1.msra.mxu0 0.0
    %244 = vmatprep.subr.mxu0 0.0
    %245 = vmatpush1.msra.mxu0 0.0
    %246 = vmatprep.subr.mxu0 0.0
    %247 = vmatpush1.msra.mxu0 0.0
    %248 = vmatprep.subr.mxu0 0.0
    %249 = vmatpush1.msra.mxu0 0.0
    %250 = vmatprep.subr.mxu0 0.0
    %251 = vmatpush1.msra.mxu0 0.0
    %252 = vmatprep.subr.mxu0 0.0
    %253 = vmatpush1.msra.mxu0 0.0
    %254 = vmatprep.subr.mxu0 0.0
    %255 = vmatpush1.msra.mxu0 0.0
    %256 = vmatprep.subr.mxu0 0.0
    %257 = vmatpush1.msra.mxu0 0.0
    %258 = vmatprep.subr.mxu0 0.0
    %259 = vmatpush1.msra.mxu0 0.0
    %260 = vmatprep.subr.mxu0 0.0
    %261 = vmatpush1.msra.mxu0 0.0
    %262 = vmatprep.subr.mxu0 0.0
    %263 = vmatpush1.msra.mxu0 0.0
    %264 = vmatprep.subr.mxu0 0.0
    %265 = vmatpush1.msra.mxu0 0.0
    %266 = vmatprep.subr.mxu0 0.0
    %267 = vmatpush1.msra.mxu0 0.0
    %268 = vmatprep.subr.mxu0 0.0
    %269 = vmatpush1.msra.mxu0 0.0
    %270 = vmatprep.subr.mxu0 0.0
    %271 = vmatpush1.msra.mxu0 0.0
    %272 = vmatprep.subr.mxu0 0.0
    %273 = vmatpush1.msra.mxu0 0.0
    %274 = vmatprep.subr.mxu0 0.0
    %275 = vmatpush1.msra.mxu0 0.0
    %276 = vmatprep.subr.mxu0 0.0
    %277 = vmatpush1.msra.mxu0 0.0
    %278 = vmatprep.subr.mxu0 0.0
    %279 = vmatpush1.msra.mxu0 0.0
    %280 = vmatprep.subr.mxu0 0.0
    %281 = vmatpush1.msra.mxu0 0.0
    %282 = vmatprep.subr.mxu0 0.0
    %283 = vmatpush1.msra.mxu0 0.0
    %284 = vmatprep.subr.mxu0 0.0
    %285 = vmatpush1.msra.mxu0 0.0
    %286 = vmatprep.subr.mxu0 0.0
    %287 = vmatpush1.msra.mxu0 0.0
    %288 = vmatprep.subr.mxu0 0.0
    %289 = vmatpush1.msra.mxu0 0.0
    %290 = vmatprep.subr.mxu0 0.0
    %291 = vmatpush1.msra.mxu0 0.0
    %292 = vmatprep.subr.mxu0 0.0
    %293 = vmatpush1.msra.mxu0 0.0
    %294 = vmatprep.subr.mxu0 0.0
    %295 = vmatpush1.msra.mxu0 0.0
    %296 = vmatprep.subr.mxu0 0.0
    %297 = vmatpush1.msra.mxu0 0.0
    %298 = vmatprep.mubr.f32.mxu0 0.0
    %299 = vmatmul.mubr.f32.gmra.mrb[0].mxu0 %v223
    %v300 = vpop.f32.mrb[0].mxu0
    %v301 = vadd.f32 0.0, %v300
    %v302 = vpop.f32.mrb[0].mxu0
    %303 = vmatprep.mubr.f32.mxu0 0.0
    %304 = vmatmul.mubr.f32.gmra.mrb[0].mxu0 %v226
    %v305 = vpop.f32.mrb[0].mxu0
    %v306 = vadd.f32 0.0, %v305
    %v307 = vpop.f32.mrb[0].mxu0
    %308 = vmatprep.mubr.f32.mxu0 0.0
    %309 = vmatmul.mubr.f32.gmra.mrb[0].mxu0 %v229
    %v310 = vpop.f32.mrb[0].mxu0
    %v311 = vadd.f32 0.0, %v310
    %v312 = vpop.f32.mrb[0].mxu0
    %313 = vmatprep.mubr.f32.mxu0 0.0
    %314 = vmatmul.mubr.f32.gmra.mrb[0].mxu0 %v232
    %v315 = vpop.f32.mrb[0].mxu0
    %v316 = vadd.f32 0.0, %v315
    %v317 = vpop.f32.mrb[0].mxu0
    %318 = vdwg.mxu0
    %319 = vst.msk [vmem:[#allocation2] sm:$0xff] %vm142, %v301
    %320 = vst.msk [vmem:[#allocation2 + $0x8] sm:$0xff] %vm142, %v306
    %321 = vst.msk [vmem:[#allocation2 + $0x10] sm:$0xff] %vm142, %v311
    %322 = vst.msk [vmem:[#allocation2 + $0x18] sm:$0xff] %vm142, %v316
    %v323 = vld [vmem:[%s6] sm:$0xff]
    %v324 = vld [vmem:[%s6 + $0x8] sm:$0xff]
    %v325 = vld [vmem:[%s6 + $0x10] sm:$0xff]
    %v326 = vld [vmem:[%s6 + $0x18] sm:$0xff]
    %327 = vmatprep.subr.mxu0 0.0
    %328 = vmatpush1.msra.mxu0 %v323
    %329 = vmatprep.subr.mxu0 0.0
    %330 = vmatpush1.msra.mxu0 %v324
    %331 = vmatprep.subr.mxu0 0.0
    %332 = vmatpush1.msra.mxu0 %v325
    %333 = vmatprep.subr.mxu0 0.0
    %334 = vmatpush1.msra.mxu0 %v326
    %335 = vmatprep.subr.mxu0 0.0
    %336 = vmatpush1.msra.mxu0 0.0
    %337 = vmatprep.subr.mxu0 0.0
    %338 = vmatpush1.msra.mxu0 0.0
    %339 = vmatprep.subr.mxu0 0.0
    %340 = vmatpush1.msra.mxu0 0.0
    %341 = vmatprep.subr.mxu0 0.0
    %342 = vmatpush1.msra.mxu0 0.0
    %343 = vmatprep.subr.mxu0 0.0
    %344 = vmatpush1.msra.mxu0 0.0
    %345 = vmatprep.subr.mxu0 0.0
    %346 = vmatpush1.msra.mxu0 0.0
    %347 = vmatprep.subr.mxu0 0.0
    %348 = vmatpush1.msra.mxu0 0.0
    %349 = vmatprep.subr.mxu0 0.0
    %350 = vmatpush1.msra.mxu0 0.0
    %351 = vmatprep.subr.mxu0 0.0
    %352 = vmatpush1.msra.mxu0 0.0
    %353 = vmatprep.subr.mxu0 0.0
    %354 = vmatpush1.msra.mxu0 0.0
    %355 = vmatprep.subr.mxu0 0.0
    %356 = vmatpush1.msra.mxu0 0.0
    %357 = vmatprep.subr.mxu0 0.0
    %358 = vmatpush1.msra.mxu0 0.0
    %359 = vmatprep.subr.mxu0 0.0
    %360 = vmatpush1.msra.mxu0 0.0
    %361 = vmatprep.subr.mxu0 0.0
    %362 = vmatpush1.msra.mxu0 0.0
    %363 = vmatprep.subr.mxu0 0.0
    %364 = vmatpush1.msra.mxu0 0.0
    %365 = vmatprep.subr.mxu0 0.0
    %366 = vmatpush1.msra.mxu0 0.0
    %367 = vmatprep.subr.mxu0 0.0
    %368 = vmatpush1.msra.mxu0 0.0
    %369 = vmatprep.subr.mxu0 0.0
    %370 = vmatpush1.msra.mxu0 0.0
    %371 = vmatprep.subr.mxu0 0.0
    %372 = vmatpush1.msra.mxu0 0.0
    %373 = vmatprep.subr.mxu0 0.0
    %374 = vmatpush1.msra.mxu0 0.0
    %375 = vmatprep.subr.mxu0 0.0
    %376 = vmatpush1.msra.mxu0 0.0
    %377 = vmatprep.subr.mxu0 0.0
    %378 = vmatpush1.msra.mxu0 0.0
    %379 = vmatprep.subr.mxu0 0.0
    %380 = vmatpush1.msra.mxu0 0.0
    %381 = vmatprep.subr.mxu0 0.0
    %382 = vmatpush1.msra.mxu0 0.0
    %383 = vmatprep.subr.mxu0 0.0
    %384 = vmatpush1.msra.mxu0 0.0
    %385 = vmatprep.subr.mxu0 0.0
    %386 = vmatpush1.msra.mxu0 0.0
    %387 = vmatprep.subr.mxu0 0.0
    %388 = vmatpush1.msra.mxu0 0.0
    %389 = vmatprep.subr.mxu0 0.0
    %390 = vmatpush1.msra.mxu0 0.0
    %391 = vmatprep.mubr.f32.mxu0 0.0
    %392 = vmatmul.mubr.f32.gmra.mrb[0].mxu0 %v223
    %v393 = vpop.f32.mrb[0].mxu0
    %v394 = vadd.f32 0.0, %v393
    %v395 = vpop.f32.mrb[0].mxu0
    %396 = vmatprep.mubr.f32.mxu0 0.0
    %397 = vmatmul.mubr.f32.gmra.mrb[0].mxu0 %v226
    %v398 = vpop.f32.mrb[0].mxu0
    %v399 = vadd.f32 0.0, %v398
    %v400 = vpop.f32.mrb[0].mxu0
    %401 = vmatprep.mubr.f32.mxu0 0.0
    %402 = vmatmul.mubr.f32.gmra.mrb[0].mxu0 %v229
    %v403 = vpop.f32.mrb[0].mxu0
    %v404 = vadd.f32 0.0, %v403
    %v405 = vpop.f32.mrb[0].mxu0
    %406 = vmatprep.mubr.f32.mxu0 0.0
    %407 = vmatmul.mubr.f32.gmra.mrb[0].mxu0 %v232
    %v408 = vpop.f32.mrb[0].mxu0
    %v409 = vadd.f32 0.0, %v408
    %v410 = vpop.f32.mrb[0].mxu0
    %411 = vdwg.mxu0
    %412 = vst.msk [vmem:[#allocation4] sm:$0xff] %vm142, %v394
    %413 = vst.msk [vmem:[#allocation4 + $0x8] sm:$0xff] %vm142, %v399
    %414 = vst.msk [vmem:[#allocation4 + $0x10] sm:$0xff] %vm142, %v404
    %415 = vst.msk [vmem:[#allocation4 + $0x18] sm:$0xff] %vm142, %v409
    // Predicated region
    $region30: #{tpu_custom_call.1} parent=1 // pred_check
      _
    $region31: #{tpu_custom_call.1} parent=1 // pred_check_branch
      %417 = sbr.rel (0) target = $region33
    $region32: #{tpu_custom_call.1} parent=1 // pred_region
      %s419 = ssub.s32 512, 512
      %420 = vsyncadd [#allocation3], %s419
      %s421 = sshll.u32 [#allocation2], 4
      %s422 = int_to_ptr.vmem [resolvable:$true] %s421
      %427 = dma.vmem_to_hbm [thread:$0]  %s422, 512, %s7, [#allocation3], 128, 128, 8
    $region33: #{tpu_custom_call.1} parent=1 // pred_fallthru
      _
    // Predicated region
    $region34: #{tpu_custom_call.1} parent=1 // pred_check
      _
    $region35: #{tpu_custom_call.1} parent=1 // pred_check_branch
      %429 = sbr.rel (0) target = $region37
    $region36: #{tpu_custom_call.1} parent=1 // pred_region
      %s431 = ssub.s32 512, 512
      %432 = vsyncadd [#allocation5], %s431
      %s433 = sshll.u32 [#allocation4], 4
      %s434 = int_to_ptr.vmem [resolvable:$true] %s433
      %439 = dma.vmem_to_hbm [thread:$0]  %s434, 512, %s8, [#allocation5], 128, 128, 8
    $region37: #{tpu_custom_call.1} parent=1 // pred_fallthru
      _
    // Predicated region
    $region38: #{tpu_custom_call.1} parent=1 // pred_check
      _
    $region39: #{tpu_custom_call.1} parent=1 // pred_check_branch
      %441 = sbr.rel (0) target = $region41
    $region40: #{tpu_custom_call.1} parent=1 // pred_region
      %442 = dma.done [#allocation3], 512
    $region41: #{tpu_custom_call.1} parent=1 // pred_fallthru
      _
    // Predicated region
    $region42: #{tpu_custom_call.1} parent=1 // pred_check
      _
    $region43: #{tpu_custom_call.1} parent=1 // pred_check_branch
      %444 = sbr.rel (0) target = $region45
    $region44: #{tpu_custom_call.1} parent=1 // pred_region
      %445 = dma.done [#allocation5], 512
    $region45: #{tpu_custom_call.1} parent=1 // pred_fallthru
      _
    %446 = vsyncpa [#allocation3], 1
    %447 = vsyncpa [#allocation5], 1

</llo_original>
